<compile_context>
chip_gen: v6e
topology: v6e:2x2x1
jax: 0.10.0
libtpu: 0.0.40
codegen_flags: <defaults>
</compile_context>

<pallas_src>
import functools

import jax
import jax.numpy as jnp
from jax.experimental import pallas as pl
from jax.experimental.pallas import tpu as pltpu


def _bessel_basis_kernel(d_ref, freq_ref, out_ref, *, inv_cutoff, p):
    # Envelope polynomial coefficients (Python floats, computed at trace time).
    a = -(p + 1) * (p + 2) / 2.0
    b = float(p * (p + 2))
    c = -p * (p + 1) / 2.0

    # Edges live on the lane axis: d block is (1, block_e), lane-contiguous.
    x = d_ref[...] * inv_cutoff                       # d_scaled, (1, block_e)

    # Envelope: 1/x + a*x^(p-1) + b*x^p + c*x^(p+1)
    x_pm1 = x ** (p - 1)
    x_p = x_pm1 * x
    x_pp1 = x_p * x
    # Exact reciprocal: approx=True (~2^-12 rel. error) would exceed 1e-5 rtol.
    env = pl.reciprocal(x, approx=False) + a * x_pm1 + b * x_p + c * x_pp1

    freqs = freq_ref[...]                             # (num_radial, 1), resident
    # (num_radial, 1) * (1, block_e) -> (num_radial, block_e); full-lane stores.
    out_ref[...] = env * jnp.sin(freqs * x)


def bessel_basis_layer(d, frequencies, *, cutoff, envelope_exponent,
                       max_block_edges=64 * 1024):
    """d: (E,) float32 edge distances; frequencies: (num_radial,) float32.
    Returns rbf: (E, num_radial) float32 (same layout as the PyTorch module)."""
    E = int(d.shape[0])
    num_radial = int(frequencies.shape[0])
    p = int(envelope_exponent) + 1

    # Pad the edge count to a multiple of 128 (lane width), then to a multiple
    # of the block size so the grid tiles it exactly.
    e128 = ((E + 127) // 128) * 128
    block_e = min(int(max_block_edges), e128)
    block_e = ((block_e + 127) // 128) * 128
    e_padded = ((e128 + block_e - 1) // block_e) * block_e

    # Lane-contiguous row of distances; pad with 1.0 so 1/x stays finite in the
    # padded tail (those columns are sliced away below anyway).
    d_row = jnp.pad(d.astype(jnp.float32), (0, e_padded - E),
                    constant_values=1.0).reshape(1, e_padded)
    freqs_col = frequencies.astype(jnp.float32).reshape(num_radial, 1)

    kernel = functools.partial(
        _bessel_basis_kernel, inv_cutoff=1.0 / float(cutoff), p=p)

    out = pl.pallas_call(
        kernel,
        out_shape=jax.ShapeDtypeStruct((num_radial, e_padded), jnp.float32),
        grid_spec=pltpu.PrefetchScalarGridSpec(
            num_scalar_prefetch=0,
            grid=(e_padded // block_e,),
            in_specs=[
                # d: lane-contiguous (1, block_e) tile per grid step.
                pl.BlockSpec((1, block_e), lambda i: (0, i)),
                # frequencies: tiny, kept resident (constant block index).
                pl.BlockSpec((num_radial, 1), lambda i: (0, 0)),
            ],
            out_specs=pl.BlockSpec((num_radial, block_e), lambda i: (0, i)),
        ),
        compiler_params=pltpu.CompilerParams(
            dimension_semantics=("parallel",),
        ),
    )(d_row, freqs_col)

    # Kernel works in the TPU-friendly (num_radial, E) layout; present the
    # PyTorch (E, num_radial) layout to the caller.
    return out[:, :E].T


def bessel_basis_reference(d, frequencies, *, cutoff, envelope_exponent):
    """Pure-JAX reference matching the PyTorch forward exactly."""
    p = envelope_exponent + 1
    a = -(p + 1) * (p + 2) / 2.0
    b = p * (p + 2)
    c = -p * (p + 1) / 2.0
    x = (d / cutoff)[:, None]
    x_pm1 = x ** (p - 1)
    x_p = x_pm1 * x
    x_pp1 = x_p * x
    env = 1.0 / x + a * x_pm1 + b * x_p + c * x_pp1
    return env * jnp.sin(frequencies[None, :] * x)


if __name__ == "__main__":
    num_radial = 8
    cutoff = 5.0
    envelope_exponent = 5
    num_edges = 256  # E (deliberately not a "nice" huge number)

    # Deterministic parameter init, matching reset_params(): pi * [1..num_radial]
    frequencies = jnp.pi * jnp.arange(1.0, num_radial + 1.0, dtype=jnp.float32)

    # Deterministic example edge distances in (0, cutoff)
    key = jax.random.PRNGKey(0)
    d = jax.random.uniform(
        key, (num_edges,), dtype=jnp.float32, minval=0.1, maxval=cutoff
    )

    rbf = bessel_basis_layer(
        d, frequencies, cutoff=cutoff, envelope_exponent=envelope_exponent
    )
    rbf = jax.block_until_ready(rbf)

    ref = bessel_basis_reference(
        d, frequencies, cutoff=cutoff, envelope_exponent=envelope_exponent
    )
    assert rbf.shape == (num_edges, num_radial)
    assert jnp.allclose(rbf, ref, rtol=1e-5, atol=1e-5), "mismatch vs reference"

    print("KERNEL_OK")
</pallas_src>

<mosaic_0001>
module attributes {stable_mosaic.version = 11 : i64} {
  func.func @_bessel_basis_kernel(%arg0: i32, %arg1: memref<1x256xf32, #tpu.memory_space<vmem>>, %arg2: memref<8x1xf32, #tpu.memory_space<vmem>>, %arg3: memref<8x256xf32, #tpu.memory_space<vmem>>) attributes {dimension_semantics = [#tpu.dimension_semantics<parallel>], iteration_bounds = array<i64: 1>, scalar_prefetch = 0 : i64, scratch_operands = 0 : i64, tpu.core_type = #tpu.core_type<tc>, window_params = [{transform_indices = @transform_0, window_bounds = array<i64: 1, 256>}, {pipeline_mode = #tpu.pipeline_mode<synchronous>, transform_indices = @transform_1, window_bounds = array<i64: 8, 1>}, {transform_indices = @transform_2, window_bounds = array<i64: 8, 256>}]} {
    %c0 = arith.constant 0 : index
    %c0_0 = arith.constant 0 : index
    %0 = vector.load %arg1[%c0, %c0_0] : memref<1x256xf32, #tpu.memory_space<vmem>>, vector<1x256xf32>
    %cst = arith.constant 2.000000e-01 : f32
    %1 = vector.broadcast %cst : f32 to vector<1x256xf32>
    %2 = arith.mulf %0, %1 : vector<1x256xf32>
    %3 = arith.mulf %2, %2 : vector<1x256xf32>
    %4 = arith.mulf %3, %3 : vector<1x256xf32>
    %5 = arith.mulf %2, %4 : vector<1x256xf32>
    %6 = arith.mulf %5, %2 : vector<1x256xf32>
    %7 = arith.mulf %6, %2 : vector<1x256xf32>
    %8 = tpu.reciprocal %2 : vector<1x256xf32> -> vector<1x256xf32>
    %cst_1 = arith.constant -2.800000e+01 : f32
    %9 = vector.broadcast %cst_1 : f32 to vector<1x256xf32>
    %10 = arith.mulf %9, %5 : vector<1x256xf32>
    %11 = arith.addf %8, %10 : vector<1x256xf32>
    %cst_2 = arith.constant 4.800000e+01 : f32
    %12 = vector.broadcast %cst_2 : f32 to vector<1x256xf32>
    %13 = arith.mulf %12, %6 : vector<1x256xf32>
    %14 = arith.addf %11, %13 : vector<1x256xf32>
    %cst_3 = arith.constant -2.100000e+01 : f32
    %15 = vector.broadcast %cst_3 : f32 to vector<1x256xf32>
    %16 = arith.mulf %15, %7 : vector<1x256xf32>
    %17 = arith.addf %14, %16 : vector<1x256xf32>
    %c0_4 = arith.constant 0 : index
    %c0_5 = arith.constant 0 : index
    %18 = vector.load %arg2[%c0_4, %c0_5] : memref<8x1xf32, #tpu.memory_space<vmem>>, vector<8x1xf32>
    %19 = vector.broadcast %18 : vector<8x1xf32> to vector<8x256xf32>
    %20 = vector.broadcast %2 : vector<1x256xf32> to vector<8x256xf32>
    %21 = arith.mulf %19, %20 : vector<8x256xf32>
    %22 = math.sin %21 : vector<8x256xf32>
    %23 = vector.broadcast %17 : vector<1x256xf32> to vector<8x256xf32>
    %24 = arith.mulf %23, %22 : vector<8x256xf32>
    %c0_6 = arith.constant 0 : index
    %c0_7 = arith.constant 0 : index
    %25 = vector.load %arg3[%c0_6, %c0_7] : memref<8x256xf32, #tpu.memory_space<vmem>>, vector<8x256xf32>
    tpu.vector_store %arg3[%c0_6, %c0_7], %24 {strides = array<i32>} : memref<8x256xf32, #tpu.memory_space<vmem>>, vector<8x256xf32>,
    return
  }
  func.func @transform_0(%arg0: i32) -> (i32, i32) {
    %c0_i32 = arith.constant 0 : i32
    %c0_i32_0 = arith.constant 0 : i32
    return %c0_i32, %arg0 : i32, i32
  }
  func.func @transform_1(%arg0: i32) -> (i32, i32) {
    %c0_i32 = arith.constant 0 : i32
    %c0_i32_0 = arith.constant 0 : i32
    %c0_i32_1 = arith.constant 0 : i32
    return %c0_i32, %c0_i32_0 : i32, i32
  }
  func.func @transform_2(%arg0: i32) -> (i32, i32) {
    %c0_i32 = arith.constant 0 : i32
    %c0_i32_0 = arith.constant 0 : i32
    return %c0_i32, %arg0 : i32, i32
  }
}

</mosaic_0001>

<llo_original>
// kernel: tpu_custom_call.1
$region0: #{tpu_custom_call.1}
  #allocation0 [shape = 'u32[]', space=smem, size = 0x4, offset = 0x4, fixed_abs, tag = 'smem constant byte address 0x4 - core index']
  #allocation1 [shape = 'u32[144,128]{1,0:T(1,128)}', space=vmem, size = 0x12000, scoped, tag = 'internal scratch']
  %s0 = inlined_call_operand.vmem [shape: f32[1,256], index: 0, kind: input, shape index: {}]
  %s1 = inlined_call_operand.vmem [shape: f32[8,1], index: 1, kind: input, shape index: {}]
  %s2 = inlined_call_operand.hbm [shape: f32[8,256], index: 2, kind: output, shape index: {}]
  %s3 = sld [smem:[#allocation0]]
  $region18: #{tpu_custom_call.1} parent=0
    _
  %s5 = ssub.s32 1, %s3
  %s6 = scalar_select 0, %s5, %s3
  $region1: #{tpu_custom_call.1} parent=0
    #allocation2 [shape = 'u8[8192]{0}', space=vmem, size = 0x2000, scoped, tag = 'output window, operand 0, single buffered']
    #allocation3 [shape = 's32[1]{0}', space=sflag, size = 0x4, scoped, tag = 'scoped memory for tpu_custom_call.1']
    %7 = vsyncpa [#allocation3], 0
    // Predicated region
    $region2: #{tpu_custom_call.1} parent=1 // pred_check
      _
    $region3: #{tpu_custom_call.1} parent=1 // pred_check_branch
      %9 = sbr.rel (0) target = $region5
    $region4: #{tpu_custom_call.1} parent=1 // pred_region
      _
    $region5: #{tpu_custom_call.1} parent=1 // pred_fallthru
      _
    // Predicated region
    $region6: #{tpu_custom_call.1} parent=1 // pred_check
      _
    $region7: #{tpu_custom_call.1} parent=1 // pred_check_branch
      %11 = sbr.rel (0) target = $region9
    $region8: #{tpu_custom_call.1} parent=1 // pred_region
      _
    $region9: #{tpu_custom_call.1} parent=1 // pred_fallthru
      _
    %v12 = vld [vmem:[%s0] sm:$0x3]
    %v13 = vmul.f32 %v12, 0.2
    %v14 = vmul.f32 %v13, %v13
    %v15 = vmul.f32 %v14, %v14
    %v16 = vmul.f32 %v13, %v15
    %v17 = vmul.f32 %v16, %v13
    %v18 = vmul.f32 %v17, %v13
    %v19 = vrcp.pop %v13
    %v20 = vmul.f32 %v16, -28.0
    %v21 = vadd.f32 %v19, %v20
    %v22 = vmul.f32 %v17, 48.0
    %v23 = vadd.f32 %v21, %v22
    %v24 = vmul.f32 %v18, -21.0
    %v25 = vadd.f32 %v23, %v24
    %v26 = vld [vmem:[%s1] sm:$0xff]
    %28 = vset.pattern.permute.xlu0 0
    %29 = vperm.xlu0 %28, %v26
    %v30 = vpop.permute.xlu0 %29
    %v33 = vlaneseq
    %v34 = vshrl.u32 %v33, 7
    %v35 = vsub.s32 0, %v34
    %v36 = vrot.slane %v13, %v35
    %v37 = vlaneseq
    %v38 = vshrl.u32 %v37, 7
    %v39 = vsub.s32 1, %v38
    %v40 = vrot.slane %v13, %v39
    %v43 = vmul.f32 %v30, %v36
    %v44 = vmul.f32 %v30, %v40
    %v45 = vand.u32 2147483647, %v43
    %vm46 = vcmp.le.f32.partialorder %v45, 0.7853982
    %vm47 = vcmp.lt.s32.totalorder %v43, 0
    %v48 = vand.u32 %v43, 2139095040
    %v49 = vshrl.u32 %v48, 23
    %v50 = vsub.s32 %v49, 127
    %v51 = vand.u32 2147483647, %v43
    %v52 = vand.u32 %v51, 8388607
    %v53 = vor.u32 %v52, 8388608
    %v54 = vsub.s32 0, %v53
    %v55 = vadd.s32 %v50, 1
    %vm56 = vcmp.gt.s32.totalorder %v55, 0
    %v57 = vsel %vm56, %v55, 0
    %v58 = vshrl.u32 %v57, 5
    %v59 = vand.u32 %v57, 31
    %v60 = vsub.s32 32, %v59
    %v61 = vshrl.u32 683565275, %v60
    %v62 = vshll.u32 683565275, %v59
    %v63 = vshrl.u32 2475754826, %v60
    %v64 = vor.u32 %v62, %v63
    %v65 = vshll.u32 2475754826, %v59
    %v66 = vshrl.u32 2131351028, %v60
    %v67 = vor.u32 %v65, %v66
    %v68 = vshll.u32 2131351028, %v59
    %v69 = vshrl.u32 2102212464, %v60
    %v70 = vor.u32 %v68, %v69
    %v71 = vshll.u32 2102212464, %v59
    %v72 = vshrl.u32 920167782, %v60
    %v73 = vor.u32 %v71, %v72
    %v74 = vshll.u32 920167782, %v59
    %v75 = vshrl.u32 1326507024, %v60
    %v76 = vor.u32 %v74, %v75
    %vm77 = vcmp.lt.s32.totalorder %v58, 1
    %vm78 = vcmp.lt.s32.totalorder %v58, 2
    %vm79 = vcmp.lt.s32.totalorder %v58, 3
    %vm80 = vcmp.lt.s32.totalorder %v58, 4
    %v81 = vsel %vm77, %v61, %v64
    %v82 = vsel %vm80, %v70, 2102212464
    %v83 = vsel %vm79, %v67, %v82
    %v84 = vsel %vm78, %v81, %v83
    %v85 = vsel %vm77, %v64, %v67
    %v86 = vsel %vm80, %v73, 920167782
    %v87 = vsel %vm79, %v70, %v86
    %v88 = vsel %vm78, %v85, %v87
    %v89 = vsel %vm77, %v67, %v70
    %v90 = vsel %vm80, %v76, 1326507024
    %v91 = vsel %vm79, %v73, %v90
    %v92 = vsel %vm78, %v89, %v91
    %v93 = vshll.u32 %v53, 8
    %v94 = vmul.u32.u64.compose %v93, %v92
    %v95 = vextract.low.u32 %v94
    %v96 = vextract.high.u32 %v94
    %v97 = vmul.u32.u64.compose %v93, %v88
    %v98 = vextract.low.u32 %v97
    %v99 = vextract.high.u32 %v97
    %v100 = vmul.u32 %v93, %v84
    %v101 = vadd.s32 %v96, %v98
    %vm102 = vc.u32 %v96, %v98
    %v103 = vadd.s32 %v99, 1
    %v104 = vsel %vm102, %v103, %v99
    %v105 = vadd.s32 %v100, %v104
    %v106 = vadd.s32 %v105, 536870912
    %v107 = vshrl.u32 %v106, 30
    %v108 = vshll.u32 %v107, 30
    %v109 = vsub.s32 %v105, %v108
    %vm110 = vcmp.lt.s32.totalorder %v109, 0
    %v111 = vsub.s32 0, %v109
    %v112 = vsel %vm110, %v111, %v109
    %v113 = vclz %v112
    %v114 = vsub.s32 %v113, 2
    %vm115 = vcmp.gt.s32.totalorder 0, %v114
    %v116 = vsel %vm115, 0, %v114
    %v117 = vsub.s32 32, %v116
    %v118 = vshll.u32 %v109, %v116
    %v119 = vshrl.u32 %v101, %v117
    %v120 = vor.u32 %v118, %v119
    %v121 = vsub.s32 4294967266, %v116
    %v122 = vadd.s32 %v121, 127
    %v123 = vshll.u32 %v122, 23
    %v124 = vor.u32 4788187, %v123
    %v125 = vand.u32 2147483647, %v124
    %v127 = vcvt.s32.f32 %v120
    %v128 = vmul.f32 %v127, %v125
    %v129 = vxor.u32 %v128, 2147483648
    %v130 = vsel %vm47, %v129, %v128
    %v131 = vsub.s32 4, %v107
    %v132 = vsel %vm47, %v131, %v107
    %v133 = vsel %vm46, %v43, %v130
    %v134 = vsel %vm46, 0, %v132
    %v135 = vcosq.f32.pop %v133
    %v136 = vsinq.f32.pop %v133
    %vm137 = vweird.f32 %v43
    %v138 = vadd.s32 %v134, 3
    %v139 = vand.u32 %v138, 3
    %vm140 = vcmp.lt.s32.totalorder %v139, 2
    %vm141 = vcmp.eq.s32.totalorder %v139, 0
    %v142 = vxor.u32 %v136, 2147483648
    %v143 = vsel %vm141, %v135, %v142
    %vm144 = vcmp.eq.s32.totalorder %v139, 2
    %v145 = vxor.u32 %v135, 2147483648
    %v146 = vsel %vm144, %v145, %v136
    %v147 = vsel %vm140, %v143, %v146
    %v148 = vsel %vm137, nan, %v147
    %v149 = vand.u32 2147483647, %v44
    %vm150 = vcmp.le.f32.partialorder %v149, 0.7853982
    %vm151 = vcmp.lt.s32.totalorder %v44, 0
    %v152 = vand.u32 %v44, 2139095040
    %v153 = vshrl.u32 %v152, 23
    %v154 = vsub.s32 %v153, 127
    %v155 = vand.u32 2147483647, %v44
    %v156 = vand.u32 %v155, 8388607
    %v157 = vor.u32 %v156, 8388608
    %v158 = vsub.s32 0, %v157
    %v159 = vadd.s32 %v154, 1
    %vm160 = vcmp.gt.s32.totalorder %v159, 0
    %v161 = vsel %vm160, %v159, 0
    %v162 = vshrl.u32 %v161, 5
    %v163 = vand.u32 %v161, 31
    %v164 = vsub.s32 32, %v163
    %v165 = vshrl.u32 683565275, %v164
    %v166 = vshll.u32 683565275, %v163
    %v167 = vshrl.u32 2475754826, %v164
    %v168 = vor.u32 %v166, %v167
    %v169 = vshll.u32 2475754826, %v163
    %v170 = vshrl.u32 2131351028, %v164
    %v171 = vor.u32 %v169, %v170
    %v172 = vshll.u32 2131351028, %v163
    %v173 = vshrl.u32 2102212464, %v164
    %v174 = vor.u32 %v172, %v173
    %v175 = vshll.u32 2102212464, %v163
    %v176 = vshrl.u32 920167782, %v164
    %v177 = vor.u32 %v175, %v176
    %v178 = vshll.u32 920167782, %v163
    %v179 = vshrl.u32 1326507024, %v164
    %v180 = vor.u32 %v178, %v179
    %vm181 = vcmp.lt.s32.totalorder %v162, 1
    %vm182 = vcmp.lt.s32.totalorder %v162, 2
    %vm183 = vcmp.lt.s32.totalorder %v162, 3
    %vm184 = vcmp.lt.s32.totalorder %v162, 4
    %v185 = vsel %vm181, %v165, %v168
    %v186 = vsel %vm184, %v174, 2102212464
    %v187 = vsel %vm183, %v171, %v186
    %v188 = vsel %vm182, %v185, %v187
    %v189 = vsel %vm181, %v168, %v171
    %v190 = vsel %vm184, %v177, 920167782
    %v191 = vsel %vm183, %v174, %v190
    %v192 = vsel %vm182, %v189, %v191
    %v193 = vsel %vm181, %v171, %v174
    %v194 = vsel %vm184, %v180, 1326507024
    %v195 = vsel %vm183, %v177, %v194
    %v196 = vsel %vm182, %v193, %v195
    %v197 = vshll.u32 %v157, 8
    %v198 = vmul.u32.u64.compose %v197, %v196
    %v199 = vextract.low.u32 %v198
    %v200 = vextract.high.u32 %v198
    %v201 = vmul.u32.u64.compose %v197, %v192
    %v202 = vextract.low.u32 %v201
    %v203 = vextract.high.u32 %v201
    %v204 = vmul.u32 %v197, %v188
    %v205 = vadd.s32 %v200, %v202
    %vm206 = vc.u32 %v200, %v202
    %v207 = vadd.s32 %v203, 1
    %v208 = vsel %vm206, %v207, %v203
    %v209 = vadd.s32 %v204, %v208
    %v210 = vadd.s32 %v209, 536870912
    %v211 = vshrl.u32 %v210, 30
    %v212 = vshll.u32 %v211, 30
    %v213 = vsub.s32 %v209, %v212
    %vm214 = vcmp.lt.s32.totalorder %v213, 0
    %v215 = vsub.s32 0, %v213
    %v216 = vsel %vm214, %v215, %v213
    %v217 = vclz %v216
    %v218 = vsub.s32 %v217, 2
    %vm219 = vcmp.gt.s32.totalorder 0, %v218
    %v220 = vsel %vm219, 0, %v218
    %v221 = vsub.s32 32, %v220
    %v222 = vshll.u32 %v213, %v220
    %v223 = vshrl.u32 %v205, %v221
    %v224 = vor.u32 %v222, %v223
    %v225 = vsub.s32 4294967266, %v220
    %v226 = vadd.s32 %v225, 127
    %v227 = vshll.u32 %v226, 23
    %v228 = vor.u32 4788187, %v227
    %v229 = vand.u32 2147483647, %v228
    %v231 = vcvt.s32.f32 %v224
    %v232 = vmul.f32 %v231, %v229
    %v233 = vxor.u32 %v232, 2147483648
    %v234 = vsel %vm151, %v233, %v232
    %v235 = vsub.s32 4, %v211
    %v236 = vsel %vm151, %v235, %v211
    %v237 = vsel %vm150, %v44, %v234
    %v238 = vsel %vm150, 0, %v236
    %v239 = vcosq.f32.pop %v237
    %v240 = vsinq.f32.pop %v237
    %vm241 = vweird.f32 %v44
    %v242 = vadd.s32 %v238, 3
    %v243 = vand.u32 %v242, 3
    %vm244 = vcmp.lt.s32.totalorder %v243, 2
    %vm245 = vcmp.eq.s32.totalorder %v243, 0
    %v246 = vxor.u32 %v240, 2147483648
    %v247 = vsel %vm245, %v239, %v246
    %vm248 = vcmp.eq.s32.totalorder %v243, 2
    %v249 = vxor.u32 %v239, 2147483648
    %v250 = vsel %vm248, %v249, %v240
    %v251 = vsel %vm244, %v247, %v250
    %v252 = vsel %vm241, nan, %v251
    %v254 = vlaneseq
    %v255 = vshrl.u32 %v254, 7
    %v256 = vsub.s32 0, %v255
    %v257 = vrot.slane %v25, %v256
    %v258 = vlaneseq
    %v259 = vshrl.u32 %v258, 7
    %v260 = vsub.s32 1, %v259
    %v261 = vrot.slane %v25, %v260
    %v264 = vmul.f32 %v257, %v148
    %v265 = vmul.f32 %v261, %v252
    %266 = vst [vmem:[#allocation2] sm:$0xff] %v264
    %267 = vst [vmem:[#allocation2 + $0x8] sm:$0xff] %v265
    // Predicated region
    $region10: #{tpu_custom_call.1} parent=1 // pred_check
      _
    $region11: #{tpu_custom_call.1} parent=1 // pred_check_branch
      %269 = sbr.rel (0) target = $region13
    $region12: #{tpu_custom_call.1} parent=1 // pred_region
      %s271 = ssub.s32 256, 256
      %272 = vsyncadd [#allocation3], %s271
      %s274 = sshll.u32 [#allocation2], 4
      %s275 = int_to_ptr.vmem [resolvable:$true] %s274
      %277 = dma.vmem_to_hbm [thread:$0]  %s275, 256, %s2, [#allocation3]
    $region13: #{tpu_custom_call.1} parent=1 // pred_fallthru
      _
    // Predicated region
    $region14: #{tpu_custom_call.1} parent=1 // pred_check
      _
    $region15: #{tpu_custom_call.1} parent=1 // pred_check_branch
      %279 = sbr.rel (0) target = $region17
    $region16: #{tpu_custom_call.1} parent=1 // pred_region
      %280 = dma.done [#allocation3], 256
    $region17: #{tpu_custom_call.1} parent=1 // pred_fallthru
      _
    %281 = vsyncpa [#allocation3], 1

</llo_original>
